<compile_context>
chip_gen: v5e
topology: v5e:2x2
jax: 0.10.0
libtpu: 0.0.40
codegen_flags: <defaults>
</compile_context>

<pallas_src>
import functools

import jax
import jax.numpy as jnp
from jax.experimental import pallas as pl
from jax.experimental.pallas import tpu as pltpu


def lam_kernel(gamma_ref, cir_ref, x_ref, o_ref, *, half, h, w, l):
    """One block of (P, l_pad) flattened (b*c, h*w) planes.

    half : size // 2 (pool radius)
    h, w : spatial dims of each plane
    l    : h * w (true flattened extent; lanes >= l are zero padding)
    """
    x = x_ref[...]                                   # (P, l_pad), native dtype
    _, l_pad = x.shape

    one = jnp.array(1, x.dtype)
    zero = jnp.array(0, x.dtype)

    # Lane-only index maps: (1, l_pad) resident vregs reused by every 8-row
    # strip of the block (never materialized at (P, l_pad)).
    col = jax.lax.broadcasted_iota(jnp.int32, (1, l_pad), 1)   # flat h*w index
    cir = cir_ref[...]                                         # column in row

    # Cross-shaped zero-padded max pool as lane rolls (XLU) gated by (1, L)
    # multiplicative 0/1 masks (VPU); the zeros are the reference's F.pad
    # zeros and legitimately participate in the max.
    v = x                                            # vertical  (size, 1) pool
    hz = x                                           # horizontal (1, size) pool
    # TODO(synk): for large `size` a doubling cascade would cut the roll chain
    # from O(half) to O(log half) per direction; it is a no-op at size=3.
    for d in range(1, min(half, h - 1) + 1):
        s = d * w                                    # shift by whole rows
        down_g = jnp.where(col >= s, one, zero)              # (1, l_pad)
        up_g = jnp.where(col < l - s, one, zero)
        down = pltpu.roll(x, s, 1) * down_g
        up = pltpu.roll(x, l_pad - s, 1) * up_g
        v = jnp.maximum(v, jnp.maximum(down, up))
    if half >= h:                                    # window fully out of range
        v = jnp.maximum(v, zero)                     # only pad zeros remain

    for d in range(1, min(half, w - 1) + 1):
        right_g = jnp.where(cir >= d, one, zero)             # (1, l_pad)
        left_g = jnp.where(cir < w - d, one, zero)
        right = pltpu.roll(x, d, 1) * right_g
        left = pltpu.roll(x, l_pad - d, 1) * left_g
        hz = jnp.maximum(hz, jnp.maximum(right, left))
    if half >= w:
        hz = jnp.maximum(hz, zero)

    # The reference's cat/view/permute/max(dim=-1) collapses to an elementwise
    # per-channel max of the two pooled maps.
    m = jnp.maximum(v, hz).astype(jnp.float32)
    if l_pad != l:
        # Exclude lane padding from the per-plane softmax.
        pad_bias = jnp.where(col < l, jnp.float32(0), -jnp.inf)   # (1, l_pad)
        m = m + pad_bias

    # Per-plane (per-row) softmax over the flattened h*w extent.
    m_max = jnp.max(m, axis=-1, keepdims=True)
    e = jnp.exp(m - m_max)
    denom = jnp.sum(e, axis=-1, keepdims=True)
    inv = pl.reciprocal(denom)                       # exact; runs on EUP slot
    scale = gamma_ref[0] * inv                       # fold gamma into the scale

    o_ref[...] = (scale * e * x + x).astype(o_ref.dtype)


def _choose_block_rows(n, l_pad, itemsize, target_bytes=4 << 20, min_steps=4):
    """Planes per grid block: ~target_bytes per step, aligned to the packed
    sublane tile for the dtype, while keeping >= min_steps grid steps
    (>= 2 steps per TensorCore on a 2-core chip) so the BlockSpec
    double-buffer pipeline stays overlapped."""
    sub = 8 * max(1, 4 // max(1, itemsize))          # 8 f32 / 16 bf16 / 32 int8
    rows = max(1, target_bytes // max(1, l_pad * itemsize))
    rows = max(sub, (rows // sub) * sub)
    if n < 2 * sub:
        return n                                     # tiny problem: one block
    cap = max(sub, (pl.cdiv(n, min_steps) // sub) * sub)
    return min(rows, cap)


@functools.partial(jax.jit, static_argnames=("size",))
def lam_forward(x, gamma, size=3):
    if size % 2 == 0:
        size += 1
    half = size // 2
    b, c, h, w = x.shape
    n, l = b * c, h * w
    l_pad = 128 * pl.cdiv(l, 128)                    # lane-dense, unmasked vst
    itemsize = jnp.dtype(x.dtype).itemsize

    x2 = x.reshape(n, l)                             # one plane per row
    if l_pad != l:
        x2 = jnp.pad(x2, ((0, 0), (0, l_pad - l)))
    # Column-within-row map, precomputed once (avoids an in-kernel vector mod).
    cir = (jnp.arange(l_pad, dtype=jnp.int32) % w).reshape(1, l_pad)

    p_blk = _choose_block_rows(n, l_pad, itemsize)
    grid = (pl.cdiv(n, p_blk),)

    kernel = functools.partial(lam_kernel, half=half, h=h, w=w, l=l)
    out = pl.pallas_call(
        kernel,
        out_shape=jax.ShapeDtypeStruct((n, l_pad), x.dtype),
        grid_spec=pltpu.PrefetchScalarGridSpec(
            num_scalar_prefetch=1,                   # gamma -> SMEM scalar
            grid=grid,
            in_specs=[
                pl.BlockSpec((1, l_pad), lambda i, g: (0, 0)),      # cir map
                pl.BlockSpec((p_blk, l_pad), lambda i, g: (i, 0)),  # x block
            ],
            out_specs=pl.BlockSpec((p_blk, l_pad), lambda i, g: (i, 0)),
        ),
        compiler_params=pltpu.CompilerParams(
            dimension_semantics=("parallel",),
            vmem_limit_bytes=48 << 20),
        cost_estimate=pl.CostEstimate(
            flops=(10 * half + 10) * n * l_pad,
            transcendentals=n * l_pad,
            bytes_accessed=2 * n * l_pad * itemsize),
    )(gamma, cir, x2)

    if l_pad != l:
        out = out[:, :l]
    return out.reshape(b, c, h, w)


def lam_reference(x, gamma, size=3):
    """Plain-JAX reference mirroring the PyTorch forward (for verification)."""
    if size % 2 == 0:
        size += 1
    p = size // 2
    b, c, h, w = x.shape
    xv = jnp.pad(x, ((0, 0), (0, 0), (p, p), (0, 0)))
    v = jax.lax.reduce_window(xv, -jnp.inf, jax.lax.max,
                              (1, 1, size, 1), (1, 1, 1, 1), "VALID")
    xh = jnp.pad(x, ((0, 0), (0, 0), (0, 0), (p, p)))
    hz = jax.lax.reduce_window(xh, -jnp.inf, jax.lax.max,
                               (1, 1, 1, size), (1, 1, 1, 1), "VALID")
    m = jnp.maximum(v, hz)
    s = jax.nn.softmax(m.reshape(b, c, h * w), axis=-1).reshape(b, c, h, w)
    return gamma[0] * s * x + x


if __name__ == "__main__":
    key = jax.random.PRNGKey(0)

    # Primary check: shapes implied by the module, (b, c, h, w) = (2, 4, 16, 16).
    b, c, h, w = 2, 4, 16, 16
    x = jax.random.normal(key, (b, c, h, w), jnp.float32)
    gamma = jnp.ones((1,), jnp.float32)              # nn.Parameter(torch.ones(1))
    # query_conv / key_conv / value_conv / max3 are dead code in the reference
    # forward (overwritten / unused), so no parameters are needed for them.

    out = jax.block_until_ready(lam_forward(x, gamma, size=3))
    ref = lam_reference(x, gamma, size=3)
    assert jnp.allclose(out, ref, atol=1e-5, rtol=1e-5), \
        f"max abs err {float(jnp.max(jnp.abs(out - ref)))}"

    # Secondary check: h*w not a multiple of 128 exercises the lane-pad path.
    x2 = jax.random.normal(jax.random.PRNGKey(1), (2, 4, 10, 10), jnp.float32)
    out2 = jax.block_until_ready(lam_forward(x2, gamma, size=3))
    ref2 = lam_reference(x2, gamma, size=3)
    assert jnp.allclose(out2, ref2, atol=1e-5, rtol=1e-5), \
        f"max abs err {float(jnp.max(jnp.abs(out2 - ref2)))}"

    print("KERNEL_OK")
</pallas_src>

<mosaic_0001>
module attributes {stable_mosaic.version = 11 : i64} {
  func.func @lam_kernel(%arg0: i32, %arg1: memref<1xf32, #tpu.memory_space<smem>>, %arg2: memref<1x256xi32, #tpu.memory_space<vmem>>, %arg3: memref<8x256xf32, #tpu.memory_space<vmem>>, %arg4: memref<8x256xf32, #tpu.memory_space<vmem>>) attributes {dimension_semantics = [#tpu.dimension_semantics<parallel>], iteration_bounds = array<i64: 1>, scalar_prefetch = 1 : i64, scratch_operands = 0 : i64, tpu.core_type = #tpu.core_type<tc>, window_params = [{pipeline_mode = #tpu.pipeline_mode<synchronous>, transform_indices = @transform_0, window_bounds = array<i64: 1, 256>}, {transform_indices = @transform_1, window_bounds = array<i64: 8, 256>}, {transform_indices = @transform_2, window_bounds = array<i64: 8, 256>}]} {
    %c0 = arith.constant 0 : index
    %c0_0 = arith.constant 0 : index
    %0 = vector.load %arg3[%c0, %c0_0] : memref<8x256xf32, #tpu.memory_space<vmem>>, vector<8x256xf32>
    %1 = tpu.iota {dimensions = array<i32: 1>} : vector<1x256xi32>
    %c0_1 = arith.constant 0 : index
    %c0_2 = arith.constant 0 : index
    %2 = vector.load %arg2[%c0_1, %c0_2] : memref<1x256xi32, #tpu.memory_space<vmem>>, vector<1x256xi32>
    %c16_i32 = arith.constant 16 : i32
    %3 = vector.broadcast %c16_i32 : i32 to vector<1x256xi32>
    %4 = arith.cmpi sge, %1, %3 : vector<1x256xi32>
    %cst = arith.constant 1.000000e+00 : f32
    %cst_3 = arith.constant 0.000000e+00 : f32
    %5 = vector.broadcast %cst : f32 to vector<1x256xf32>
    %6 = vector.broadcast %cst_3 : f32 to vector<1x256xf32>
    %7 = arith.select %4, %5, %6 : vector<1x256xi1>, vector<1x256xf32>
    %c240_i32 = arith.constant 240 : i32
    %8 = vector.broadcast %c240_i32 : i32 to vector<1x256xi32>
    %9 = arith.cmpi slt, %1, %8 : vector<1x256xi32>
    %cst_4 = arith.constant 1.000000e+00 : f32
    %cst_5 = arith.constant 0.000000e+00 : f32
    %10 = vector.broadcast %cst_4 : f32 to vector<1x256xf32>
    %11 = vector.broadcast %cst_5 : f32 to vector<1x256xf32>
    %12 = arith.select %9, %10, %11 : vector<1x256xi1>, vector<1x256xf32>
    %c16_i32_6 = arith.constant 16 : i32
    %13 = tpu.dynamic_rotate %0 by %c16_i32_6 dim 1 : vector<8x256xf32>, i32 -> vector<8x256xf32>
    %14 = vector.broadcast %7 : vector<1x256xf32> to vector<8x256xf32>
    %15 = arith.mulf %13, %14 : vector<8x256xf32>
    %c240_i32_7 = arith.constant 240 : i32
    %16 = tpu.dynamic_rotate %0 by %c240_i32_7 dim 1 : vector<8x256xf32>, i32 -> vector<8x256xf32>
    %17 = vector.broadcast %12 : vector<1x256xf32> to vector<8x256xf32>
    %18 = arith.mulf %16, %17 : vector<8x256xf32>
    %19 = arith.maximumf %15, %18 : vector<8x256xf32>
    %20 = arith.maximumf %0, %19 : vector<8x256xf32>
    %c1_i32 = arith.constant 1 : i32
    %21 = vector.broadcast %c1_i32 : i32 to vector<1x256xi32>
    %22 = arith.cmpi sge, %2, %21 : vector<1x256xi32>
    %cst_8 = arith.constant 1.000000e+00 : f32
    %cst_9 = arith.constant 0.000000e+00 : f32
    %23 = vector.broadcast %cst_8 : f32 to vector<1x256xf32>
    %24 = vector.broadcast %cst_9 : f32 to vector<1x256xf32>
    %25 = arith.select %22, %23, %24 : vector<1x256xi1>, vector<1x256xf32>
    %c15_i32 = arith.constant 15 : i32
    %26 = vector.broadcast %c15_i32 : i32 to vector<1x256xi32>
    %27 = arith.cmpi slt, %2, %26 : vector<1x256xi32>
    %cst_10 = arith.constant 1.000000e+00 : f32
    %cst_11 = arith.constant 0.000000e+00 : f32
    %28 = vector.broadcast %cst_10 : f32 to vector<1x256xf32>
    %29 = vector.broadcast %cst_11 : f32 to vector<1x256xf32>
    %30 = arith.select %27, %28, %29 : vector<1x256xi1>, vector<1x256xf32>
    %c1_i32_12 = arith.constant 1 : i32
    %31 = tpu.dynamic_rotate %0 by %c1_i32_12 dim 1 : vector<8x256xf32>, i32 -> vector<8x256xf32>
    %32 = vector.broadcast %25 : vector<1x256xf32> to vector<8x256xf32>
    %33 = arith.mulf %31, %32 : vector<8x256xf32>
    %c255_i32 = arith.constant 255 : i32
    %34 = tpu.dynamic_rotate %0 by %c255_i32 dim 1 : vector<8x256xf32>, i32 -> vector<8x256xf32>
    %35 = vector.broadcast %30 : vector<1x256xf32> to vector<8x256xf32>
    %36 = arith.mulf %34, %35 : vector<8x256xf32>
    %37 = arith.maximumf %33, %36 : vector<8x256xf32>
    %38 = arith.maximumf %0, %37 : vector<8x256xf32>
    %39 = arith.maximumf %20, %38 : vector<8x256xf32>
    %cst_13 = arith.constant dense<0xFF800000> : vector<8xf32>
    %40 = vector.multi_reduction <maximumf>, %39, %cst_13 [1] : vector<8x256xf32> to vector<8xf32>
    %41 = vector.shape_cast %40 : vector<8xf32> to vector<8x1xf32>
    %42 = vector.broadcast %41 : vector<8x1xf32> to vector<8x256xf32>
    %43 = arith.subf %39, %42 : vector<8x256xf32>
    %44 = math.exp %43 : vector<8x256xf32>
    %cst_14 = arith.constant dense<0.000000e+00> : vector<8xf32>
    %45 = vector.multi_reduction <add>, %44, %cst_14 [1] : vector<8x256xf32> to vector<8xf32>
    %46 = vector.shape_cast %45 : vector<8xf32> to vector<8x1xf32>
    %47 = tpu.reciprocal %46 : vector<8x1xf32> -> vector<8x1xf32>
    %c0_15 = arith.constant 0 : index
    %48 = memref.load %arg1[%c0_15] : memref<1xf32, #tpu.memory_space<smem>>
    %49 = vector.broadcast %48 : f32 to vector<8x1xf32>
    %50 = arith.mulf %49, %47 : vector<8x1xf32>
    %51 = vector.broadcast %50 : vector<8x1xf32> to vector<8x256xf32>
    %52 = arith.mulf %51, %44 : vector<8x256xf32>
    %53 = arith.mulf %52, %0 : vector<8x256xf32>
    %54 = arith.addf %53, %0 : vector<8x256xf32>
    %c0_16 = arith.constant 0 : index
    %c0_17 = arith.constant 0 : index
    %55 = vector.load %arg4[%c0_16, %c0_17] : memref<8x256xf32, #tpu.memory_space<vmem>>, vector<8x256xf32>
    tpu.vector_store %arg4[%c0_16, %c0_17], %54 {strides = array<i32>} : memref<8x256xf32, #tpu.memory_space<vmem>>, vector<8x256xf32>,
    return
  }
  func.func @transform_0(%arg0: i32, %arg1: memref<1xf32, #tpu.memory_space<smem>>) -> (i32, i32) {
    %c0_i32 = arith.constant 0 : i32
    %c0_i32_0 = arith.constant 0 : i32
    %c0_i32_1 = arith.constant 0 : i32
    return %c0_i32, %c0_i32_0 : i32, i32
  }
  func.func @transform_1(%arg0: i32, %arg1: memref<1xf32, #tpu.memory_space<smem>>) -> (i32, i32) {
    %c0_i32 = arith.constant 0 : i32
    %c0_i32_0 = arith.constant 0 : i32
    return %arg0, %c0_i32 : i32, i32
  }
  func.func @transform_2(%arg0: i32, %arg1: memref<1xf32, #tpu.memory_space<smem>>) -> (i32, i32) {
    %c0_i32 = arith.constant 0 : i32
    %c0_i32_0 = arith.constant 0 : i32
    return %arg0, %c0_i32 : i32, i32
  }
}

</mosaic_0001>

<llo_original>
// kernel: lam_forward.1
$region0: #{lam_forward.1}
  #allocation0 [shape = 'u32[]', space=smem, size = 0x4, offset = 0x4, fixed_abs, tag = 'smem constant byte address 0x4 - core index']
  #allocation1 [shape = 'u32[72,128]{1,0:T(1,128)}', space=vmem, size = 0x9000, scoped, tag = 'internal scratch']
  #allocation2 [shape = 's32[1]{0}', space=sflag, size = 0x4, scoped, tag = 'scoped memory for lam_forward.1']
  #allocation3 [shape = 'f32[1]{0:T(128)S(6)}', space=smem, size = 0x200, scoped, tag = 'prefetched SMEM operand 0']
  %s0 = inlined_call_operand.<no memory space> [shape: f32[1], index: 0, kind: input, shape index: {}]
  %s1 = inlined_call_operand.vmem [shape: s32[1,256], index: 1, kind: input, shape index: {}]
  %s2 = inlined_call_operand.vmem [shape: f32[8,256], index: 2, kind: input, shape index: {}]
  %s3 = inlined_call_operand.vmem [shape: f32[8,256], index: 3, kind: output, shape index: {}]
  %s4 = sld [smem:[#allocation0]]
  $region18: #{lam_forward.1} parent=0
    _
  %s6 = ssub.s32 1, %s4
  %s7 = scalar_select 0, %s6, %s4
  %8 = sst [smem:[#allocation3]] %s0
  // Predicated region
  $region2: #{lam_forward.1} parent=0 // pred_check
    _
  $region3: #{lam_forward.1} parent=0 // pred_check_branch
    %10 = sbr.rel (0) target = $region5
  $region4: #{lam_forward.1} parent=0 // pred_region
    _
  $region5: #{lam_forward.1} parent=0 // pred_fallthru
    _
  // Predicated region
  $region6: #{lam_forward.1} parent=0 // pred_check
    _
  $region7: #{lam_forward.1} parent=0 // pred_check_branch
    %12 = sbr.rel (0) target = $region9
  $region8: #{lam_forward.1} parent=0 // pred_region
    _
  $region9: #{lam_forward.1} parent=0 // pred_fallthru
    _
  %v13 = vld [vmem:[%s2] sm:$0xff]
  %v14 = vld [vmem:[%s2 + $0x8] sm:$0xff]
  %v15 = vlaneseq
  %v16 = vand.u32 %v15, 127
  %v17 = vadd.s32 %v16, 128
  %v18 = vld [vmem:[%s1] sm:$0x3]
  %vm19 = vcmp.ge.s32.totalorder %v16, 16
  %vm20 = vcmp.ge.s32.totalorder %v17, 16
  %v21 = vsel %vm19, 1.0, 0.0
  %v22 = vsel %vm20, 1.0, 0.0
  %vm23 = vcmp.lt.s32.totalorder %v16, 240
  %vm24 = vcmp.lt.s32.totalorder %v17, 240
  %v25 = vsel %vm23, 1.0, 0.0
  %v26 = vsel %vm24, 1.0, 0.0
  %27 = vrot.lane.b32.xlu0 %v13, 16
  %v28 = vpop.permute.xlu0 %27
  %29 = vrot.lane.b32.xlu0 %v14, 16
  %v30 = vpop.permute.xlu0 %29
  %vm31 = vcmp.lt.s32.totalorder %v16, 16
  %v32 = vsel %vm31, %v28, %v30
  %v33 = vsel %vm31, %v30, %v28
  %v34 = vmul.f32 %v33, %v21
  %v35 = vmul.f32 %v32, %v22
  %36 = vrot.lane.b32.xlu0 %v13, 112
  %v37 = vpop.permute.xlu0 %36
  %38 = vrot.lane.b32.xlu0 %v14, 112
  %v39 = vpop.permute.xlu0 %38
  %vm40 = vcmp.lt.s32.totalorder %v16, 112
  %v41 = vsel %vm40, %v37, %v39
  %v42 = vsel %vm40, %v39, %v37
  %v43 = vmul.f32 %v41, %v25
  %v44 = vmul.f32 %v42, %v26
  %v45 = vmax.f32 %v34, %v43
  %v46 = vmax.f32 %v35, %v44
  %v47 = vmax.f32 %v13, %v45
  %v48 = vmax.f32 %v14, %v46
  %vm49 = vcmp.ge.s32.totalorder %v18, 1
  %v50 = vsel %vm49, 1.0, 0.0
  %vm51 = vcmp.lt.s32.totalorder %v18, 15
  %v52 = vsel %vm51, 1.0, 0.0
  %53 = vrot.lane.b32.xlu0 %v13, 1
  %v54 = vpop.permute.xlu0 %53
  %55 = vrot.lane.b32.xlu0 %v14, 1
  %v56 = vpop.permute.xlu0 %55
  %vm57 = vcmp.lt.s32.totalorder %v16, 1
  %v58 = vsel %vm57, %v54, %v56
  %v59 = vsel %vm57, %v56, %v54
  %v61 = vperm.slane %v50, 0
  %v62 = vperm.slane %v50, 1
  %v65 = vmul.f32 %v59, %v61
  %v66 = vmul.f32 %v58, %v62
  %67 = vrot.lane.b32.xlu0 %v13, 127
  %v68 = vpop.permute.xlu0 %67
  %69 = vrot.lane.b32.xlu0 %v14, 127
  %v70 = vpop.permute.xlu0 %69
  %vm71 = vcmp.lt.s32.totalorder %v16, 127
  %v72 = vsel %vm71, %v68, %v70
  %v73 = vsel %vm71, %v70, %v68
  %v75 = vperm.slane %v52, 0
  %v76 = vperm.slane %v52, 1
  %v79 = vmul.f32 %v72, %v75
  %v80 = vmul.f32 %v73, %v76
  %v81 = vmax.f32 %v65, %v79
  %v82 = vmax.f32 %v66, %v80
  %v83 = vmax.f32 %v13, %v81
  %v84 = vmax.f32 %v14, %v82
  %v85 = vmax.f32 %v47, %v83
  %v86 = vmax.f32 %v48, %v84
  %v87 = vmax.f32 %v85, %v86
  %88 = vmax.xlane.f32.xlu0 %v87
  %v89 = vpop.xlane.xlu0 %88
  %v90 = vsub.f32 %v85, %v89
  %v91 = vsub.f32 %v86, %v89
  %v92 = vmul.f32 %v90, 1.442695
  %v93 = vpow.pop %v92
  %v94 = vmul.f32 %v91, 1.442695
  %v95 = vpow.pop %v94
  %v96 = vadd.f32 %v93, %v95
  %97 = vadd.xlane.f32.xlu0 %v96
  %v98 = vpop.xlane.xlu0 %97
  %v99 = vrcp.pop %v98
  %v100 = vmul.f32 %v98, %v99
  %v101 = vsub.f32 1.0, %v100
  %v102 = vmul.f32 %v99, %v101
  %v103 = vadd.f32 %v99, %v102
  %vm104 = vweird.f32 %v98
  %vm105 = vweird.f32 %v99
  %vm106 = vmor %vm104, %vm105
  %v107 = vsel %vm106, %v99, %v103
  %v108 = vand.u32 2147483647, %v98
  %vm109 = vcmp.eq.f32.partialorder %v108, 8.507059e+37
  %v110 = vand.u32 %v98, 2147483648
  %v111 = vor.u32 1.1754944e-38, %v110
  %v112 = vsel %vm109, %v111, %v107
  %s113 = sld [smem:[#allocation3]]
  %v114 = vstv %s113
  %v115 = vmul.f32 %v114, %v112
  %v116 = vmul.f32 %v115, %v93
  %v117 = vmul.f32 %v115, %v95
  %v118 = vmul.f32 %v116, %v13
  %v119 = vmul.f32 %v117, %v14
  %v120 = vadd.f32 %v118, %v13
  %v121 = vadd.f32 %v119, %v14
  %122 = vst [vmem:[%s3] sm:$0xff] %v120
  %123 = vst [vmem:[%s3 + $0x8] sm:$0xff] %v121
  // Predicated region
  $region10: #{lam_forward.1} parent=0 // pred_check
    _
  $region11: #{lam_forward.1} parent=0 // pred_check_branch
    %125 = sbr.rel (0) target = $region13
  $region12: #{lam_forward.1} parent=0 // pred_region
    _
  $region13: #{lam_forward.1} parent=0 // pred_fallthru
    _
  // Predicated region
  $region14: #{lam_forward.1} parent=0 // pred_check
    _
  $region15: #{lam_forward.1} parent=0 // pred_check_branch
    %127 = sbr.rel (0) target = $region17
  $region16: #{lam_forward.1} parent=0 // pred_region
    _
  $region17: #{lam_forward.1} parent=0 // pred_fallthru
    _

</llo_original>
